<compile_context>
chip_gen: v5e
topology: v5e:2x2
jax: 0.10.0
libtpu: 0.0.40
codegen_flags: <defaults>
</compile_context>

<pallas_src>
import functools

import jax
import jax.numpy as jnp
from jax.experimental import pallas as pl
from jax.experimental.pallas import tpu as pltpu


_NEG_INF = -1e30


# ------------------------------ fused kernel ------------------------------- #

def _fused_detection_loss_kernel(rpn_cls_ref,     # (3, R1, 128) f32: [l0, l1, targets]
                                 rpn_box_ref,     # (4, R2, 128) f32: [pred, tgt, inw, outw]
                                 rcnn_logits_ref,  # (Np, 128)    f32: class dim padded w/ -1e30
                                 rcnn_labels_ref,  # (Np, 128)    i32: label broadcast, -1 = pad row
                                 rcnn_box_ref,    # (4, R3, 128) f32: [pred, tgt, inw, outw]
                                 out_ref,         # (8,) f32 SMEM
                                 *, batch_size, n_rois, rpn_sigma2, rcnn_sigma2):
    # ---------------- RPN classification (lane-dense tiles) ---------------- #
    l0 = rpn_cls_ref[0]
    l1 = rpn_cls_ref[1]
    t = rpn_cls_ref[2]                 # in {-1, 0, 1}; -1 => ignore (incl. padding)

    m = jnp.maximum(l0, l1)
    lse = m + jnp.log(jnp.exp(l0 - m) + jnp.exp(l1 - m))
    picked = jnp.where(t == 1.0, l1, l0)
    keep = (t != -1.0).astype(jnp.float32)          # == index_select(rpn_keep)
    ce = (lse - picked) * keep
    pred = (l1 > l0).astype(jnp.float32)            # argmax over 2 classes
    correct = (pred == t).astype(jnp.float32) * keep

    rpn_sum_ce = jnp.sum(ce)
    rpn_kept = jnp.sum(keep)
    rpn_correct = jnp.sum(correct)

    # -------------------- weighted smooth-L1 (per slab) -------------------- #
    def smooth_l1_sum(slab_ref, sigma2):
        diff = slab_ref[2] * (slab_ref[0] - slab_ref[1])
        abs_diff = jnp.abs(diff)
        quad = (abs_diff < (1.0 / sigma2)).astype(jnp.float32)
        in_loss = (diff * diff) * (0.5 * sigma2) * quad \
                  + (abs_diff - 0.5 / sigma2) * (1.0 - quad)
        return jnp.sum(slab_ref[3] * in_loss)

    rpn_box_sum = smooth_l1_sum(rpn_box_ref, rpn_sigma2)
    rcnn_box_sum = smooth_l1_sum(rcnn_box_ref, rcnn_sigma2)

    # ----------- RCNN classification (class dim padded to 128) ------------- #
    logits = rcnn_logits_ref[...]
    labels = rcnn_labels_ref[...]
    n, c = logits.shape
    col = jax.lax.broadcasted_iota(jnp.int32, (n, c), 1)
    onehot = (col == labels).astype(jnp.float32)        # all-zero for pad rows (label=-1)
    valid = jnp.sum(onehot, axis=-1, keepdims=True)     # 1 for real rows, 0 for pad rows

    mrow = jnp.max(logits, axis=-1, keepdims=True)
    lse_r = mrow + jnp.log(jnp.sum(jnp.exp(logits - mrow), axis=-1, keepdims=True))
    picked_r = jnp.sum(logits * onehot, axis=-1, keepdims=True)
    ce_r = (lse_r - picked_r) * valid

    # first index achieving the row max == torch.argmax(dim=-1)
    first_max = jnp.min(jnp.where(logits == mrow, col, jnp.int32(c)),
                        axis=-1, keepdims=True)
    argmax_oh = (col == first_max).astype(jnp.float32)
    correct_r = jnp.sum(argmax_oh * onehot, axis=-1, keepdims=True)  # 1 iff argmax==label

    rcnn_sum_ce = jnp.sum(ce_r)
    rcnn_correct = jnp.sum(correct_r)

    # ------------------------- in-kernel epilogue --------------------------- #
    denom = jnp.maximum(rpn_kept, 1.0)                  # guard 0/0
    rpn_loss_cls = rpn_sum_ce / denom
    rpn_acc = rpn_correct / denom
    rpn_loss_box = rpn_box_sum / batch_size
    rcnn_loss_cls = rcnn_sum_ce / n_rois
    rcnn_acc = rcnn_correct / n_rois
    rcnn_loss_bbox = rcnn_box_sum / n_rois
    loss = rpn_loss_cls + rpn_loss_box + rcnn_loss_cls + rcnn_loss_bbox

    out_ref[0] = loss
    out_ref[1] = rpn_loss_cls
    out_ref[2] = rpn_loss_box
    out_ref[3] = rcnn_loss_cls
    out_ref[4] = rcnn_loss_bbox
    out_ref[5] = rpn_acc
    out_ref[6] = rcnn_acc
    out_ref[7] = rpn_kept            # diagnostic (number of kept anchors)


# ------------------------------ JAX glue ----------------------------------- #

def _pad_flat_128(x, pad_value=0.0):
    """Flatten, cast f32, zero/constant-pad to multiple of 1024, view (R, 128)."""
    x = x.reshape(-1).astype(jnp.float32)
    pad = (-x.shape[0]) % 1024
    if pad:
        x = jnp.pad(x, (0, pad), constant_values=pad_value)
    return x.reshape(-1, 128)


@jax.jit
def detection_loss_forward(rpn_cls_scores, rpn_bbox_preds,
                           rpn_cls_targets, rpn_bbox_targets,
                           rpn_bbox_inside_weights, rpn_bbox_outside_weights,
                           cls_pred, rois_label, bbox_pred,
                           rois_target, rois_inside_ws, rois_outside_ws):
    """Returns a (8,) vector:
       [loss, rpn_loss_cls, rpn_loss_box, rcnn_loss_cls, rcnn_loss_bbox,
        rpn_acc, rcnn_acc, num_kept_anchors]."""
    batch_size = rpn_cls_scores.shape[0]
    c2a, h, w = rpn_cls_scores.shape[1:]
    a = c2a // 2

    # --- RPN cls: slice class axis directly (no permute/transpose copies). ---
    # view(B,2,A*H,W).permute(0,2,3,1).view(-1,2) flattens anchors as
    # (b, a, h, w) row-major per class; r[:, c].reshape(-1) gives the same order.
    r = rpn_cls_scores.reshape(batch_size, 2, a, h, w)
    l0 = _pad_flat_128(r[:, 0], 0.0)
    l1 = _pad_flat_128(r[:, 1], 0.0)
    tgt = _pad_flat_128(rpn_cls_targets, -1.0)          # padding => ignored
    rpn_cls_slab = jnp.stack([l0, l1, tgt], axis=0)     # (3, R1, 128)

    # --- RPN box smooth-L1 slab (sigma=3, sum over [1,2,3], mean over batch). ---
    rpn_box_slab = jnp.stack(
        [_pad_flat_128(x) for x in (rpn_bbox_preds, rpn_bbox_targets,
                                    rpn_bbox_inside_weights,
                                    rpn_bbox_outside_weights)], axis=0)  # (4, R2, 128)

    # --- RCNN cls: pad class dim to 128 lanes; lane-dense broadcast labels. ---
    n_rois, n_cls = cls_pred.shape
    n_pad = ((n_rois + 7) // 8) * 8
    logits_pad = jnp.full((n_pad, 128), _NEG_INF, jnp.float32)
    logits_pad = logits_pad.at[:n_rois, :n_cls].set(cls_pred.astype(jnp.float32))
    labels_pad = jnp.full((n_pad,), -1, jnp.int32).at[:n_rois].set(
        rois_label.reshape(-1).astype(jnp.int32))
    labels_b = jnp.broadcast_to(labels_pad[:, None], (n_pad, 128))       # (Np, 128) i32

    # --- RCNN box smooth-L1 slab (sigma=1, sum over dim 1, mean over rois). ---
    rcnn_box_slab = jnp.stack(
        [_pad_flat_128(x) for x in (bbox_pred, rois_target,
                                    rois_inside_ws, rois_outside_ws)], axis=0)  # (4, R3, 128)

    out = pl.pallas_call(
        functools.partial(_fused_detection_loss_kernel,
                          batch_size=float(batch_size),
                          n_rois=float(n_rois),
                          rpn_sigma2=9.0,       # sigma=3
                          rcnn_sigma2=1.0),     # sigma=1
        out_shape=jax.ShapeDtypeStruct((8,), jnp.float32),
        in_specs=[pl.BlockSpec(memory_space=pltpu.MemorySpace.VMEM)] * 5,
        out_specs=pl.BlockSpec(memory_space=pltpu.MemorySpace.SMEM),
    )(rpn_cls_slab, rpn_box_slab, logits_pad, labels_b, rcnn_box_slab)
    return out


def detection_loss_outputs(out_vec):
    """Unpack to the torch-style 7-tuple."""
    return tuple(out_vec[i] for i in range(7))


# --------------------------------- main ------------------------------------ #

if __name__ == "__main__":
    key = jax.random.PRNGKey(0)
    ks = jax.random.split(key, 12)

    B, A, H, W = 2, 3, 8, 8                  # batch, anchors/location, feat h/w
    NUM_CLASSES, ROIS_PER_IM = 8, 16
    N_ROIS = B * ROIS_PER_IM

    # RPN head outputs (NCHW) and synthetic RPN targets.
    rpn_cls_scores = jax.random.normal(ks[0], (B, 2 * A, H, W), jnp.float32)
    rpn_bbox_preds = jax.random.normal(ks[1], (B, 4 * A, H, W), jnp.float32)
    rpn_cls_targets = jax.random.randint(ks[2], (B, A * H * W), -1, 2).astype(jnp.int32)
    rpn_bbox_targets = jax.random.normal(ks[3], (B, 4 * A, H, W), jnp.float32)
    rpn_bbox_inside_w = (jax.random.uniform(ks[4], (B, 4 * A, H, W)) > 0.5
                         ).astype(jnp.float32)
    rpn_bbox_outside_w = jnp.full((B, 4 * A, H, W), 1.0 / (A * H * W), jnp.float32)

    # RCNN head outputs and synthetic proposal targets.
    cls_pred = jax.random.normal(ks[5], (N_ROIS, NUM_CLASSES), jnp.float32)
    rois_label = jax.random.randint(ks[6], (N_ROIS,), 0, NUM_CLASSES).astype(jnp.int32)
    bbox_pred = jax.random.normal(ks[7], (N_ROIS, 4), jnp.float32)
    rois_target = jax.random.normal(ks[8], (N_ROIS, 4), jnp.float32)
    rois_inside_ws = (jax.random.uniform(ks[9], (N_ROIS, 4)) > 0.3).astype(jnp.float32)
    rois_outside_ws = jnp.ones((N_ROIS, 4), jnp.float32)

    out_vec = detection_loss_forward(
        rpn_cls_scores, rpn_bbox_preds,
        rpn_cls_targets, rpn_bbox_targets,
        rpn_bbox_inside_w, rpn_bbox_outside_w,
        cls_pred, rois_label, bbox_pred,
        rois_target, rois_inside_ws, rois_outside_ws)
    out_vec = jax.block_until_ready(out_vec)
    _ = detection_loss_outputs(out_vec)
    print("KERNEL_OK")
</pallas_src>

<mosaic_0001>
module attributes {stable_mosaic.version = 11 : i64} {
  func.func @_fused_detection_loss_kernel(%arg0: memref<3x8x128xf32, #tpu.memory_space<vmem>>, %arg1: memref<4x16x128xf32, #tpu.memory_space<vmem>>, %arg2: memref<32x128xf32, #tpu.memory_space<vmem>>, %arg3: memref<32x128xi32, #tpu.memory_space<vmem>>, %arg4: memref<4x8x128xf32, #tpu.memory_space<vmem>>, %arg5: memref<8xf32, #tpu.memory_space<smem>>) attributes {dimension_semantics = [], scalar_prefetch = 0 : i64, scratch_operands = 0 : i64, tpu.core_type = #tpu.core_type<tc>} {
    %c0 = arith.constant 0 : index
    %c0_0 = arith.constant 0 : index
    %c0_1 = arith.constant 0 : index
    %0 = vector.load %arg0[%c0, %c0_0, %c0_1] : memref<3x8x128xf32, #tpu.memory_space<vmem>>, vector<1x8x128xf32>
    %1 = vector.shape_cast %0 : vector<1x8x128xf32> to vector<8x128xf32>
    %c1 = arith.constant 1 : index
    %c0_2 = arith.constant 0 : index
    %c0_3 = arith.constant 0 : index
    %2 = vector.load %arg0[%c1, %c0_2, %c0_3] : memref<3x8x128xf32, #tpu.memory_space<vmem>>, vector<1x8x128xf32>
    %3 = vector.shape_cast %2 : vector<1x8x128xf32> to vector<8x128xf32>
    %c2 = arith.constant 2 : index
    %c0_4 = arith.constant 0 : index
    %c0_5 = arith.constant 0 : index
    %4 = vector.load %arg0[%c2, %c0_4, %c0_5] : memref<3x8x128xf32, #tpu.memory_space<vmem>>, vector<1x8x128xf32>
    %5 = vector.shape_cast %4 : vector<1x8x128xf32> to vector<8x128xf32>
    %6 = arith.maximumf %1, %3 : vector<8x128xf32>
    %7 = arith.subf %1, %6 : vector<8x128xf32>
    %8 = math.exp %7 : vector<8x128xf32>
    %9 = arith.subf %3, %6 : vector<8x128xf32>
    %10 = math.exp %9 : vector<8x128xf32>
    %11 = arith.addf %8, %10 : vector<8x128xf32>
    %12 = math.log %11 : vector<8x128xf32>
    %13 = arith.addf %6, %12 : vector<8x128xf32>
    %cst = arith.constant 1.000000e+00 : f32
    %14 = vector.broadcast %cst : f32 to vector<8x128xf32>
    %15 = arith.cmpf oeq, %5, %14 : vector<8x128xf32>
    %16 = arith.select %15, %3, %1 : vector<8x128xi1>, vector<8x128xf32>
    %cst_6 = arith.constant -1.000000e+00 : f32
    %17 = vector.broadcast %cst_6 : f32 to vector<8x128xf32>
    %18 = arith.cmpf one, %5, %17 : vector<8x128xf32>
    %19 = arith.extui %18 : vector<8x128xi1> to vector<8x128xi32>
    %20 = arith.sitofp %19 : vector<8x128xi32> to vector<8x128xf32>
    %21 = arith.subf %13, %16 : vector<8x128xf32>
    %22 = arith.mulf %21, %20 : vector<8x128xf32>
    %23 = arith.cmpf ogt, %3, %1 : vector<8x128xf32>
    %24 = arith.extui %23 : vector<8x128xi1> to vector<8x128xi32>
    %25 = arith.sitofp %24 : vector<8x128xi32> to vector<8x128xf32>
    %26 = arith.cmpf oeq, %25, %5 : vector<8x128xf32>
    %27 = arith.extui %26 : vector<8x128xi1> to vector<8x128xi32>
    %28 = arith.sitofp %27 : vector<8x128xi32> to vector<8x128xf32>
    %29 = arith.mulf %28, %20 : vector<8x128xf32>
    %30 = vector.shape_cast %22 : vector<8x128xf32> to vector<1x8x128xf32>
    %cst_7 = arith.constant dense<0.000000e+00> : vector<1xf32>
    %31 = vector.multi_reduction <add>, %30, %cst_7 [1, 2] : vector<1x8x128xf32> to vector<1xf32>
    %32 = vector.shape_cast %31 : vector<1xf32> to vector<1x1x1xf32>
    %33 = vector.extract %32[0, 0, 0] : f32 from vector<1x1x1xf32>
    %34 = vector.shape_cast %20 : vector<8x128xf32> to vector<1x8x128xf32>
    %cst_8 = arith.constant dense<0.000000e+00> : vector<1xf32>
    %35 = vector.multi_reduction <add>, %34, %cst_8 [1, 2] : vector<1x8x128xf32> to vector<1xf32>
    %36 = vector.shape_cast %35 : vector<1xf32> to vector<1x1x1xf32>
    %37 = vector.extract %36[0, 0, 0] : f32 from vector<1x1x1xf32>
    %38 = vector.shape_cast %29 : vector<8x128xf32> to vector<1x8x128xf32>
    %cst_9 = arith.constant dense<0.000000e+00> : vector<1xf32>
    %39 = vector.multi_reduction <add>, %38, %cst_9 [1, 2] : vector<1x8x128xf32> to vector<1xf32>
    %40 = vector.shape_cast %39 : vector<1xf32> to vector<1x1x1xf32>
    %41 = vector.extract %40[0, 0, 0] : f32 from vector<1x1x1xf32>
    %c2_10 = arith.constant 2 : index
    %c0_11 = arith.constant 0 : index
    %c0_12 = arith.constant 0 : index
    %42 = vector.load %arg1[%c2_10, %c0_11, %c0_12] : memref<4x16x128xf32, #tpu.memory_space<vmem>>, vector<1x16x128xf32>
    %43 = vector.shape_cast %42 : vector<1x16x128xf32> to vector<16x128xf32>
    %c0_13 = arith.constant 0 : index
    %c0_14 = arith.constant 0 : index
    %c0_15 = arith.constant 0 : index
    %44 = vector.load %arg1[%c0_13, %c0_14, %c0_15] : memref<4x16x128xf32, #tpu.memory_space<vmem>>, vector<1x16x128xf32>
    %45 = vector.shape_cast %44 : vector<1x16x128xf32> to vector<16x128xf32>
    %c1_16 = arith.constant 1 : index
    %c0_17 = arith.constant 0 : index
    %c0_18 = arith.constant 0 : index
    %46 = vector.load %arg1[%c1_16, %c0_17, %c0_18] : memref<4x16x128xf32, #tpu.memory_space<vmem>>, vector<1x16x128xf32>
    %47 = vector.shape_cast %46 : vector<1x16x128xf32> to vector<16x128xf32>
    %48 = arith.subf %45, %47 : vector<16x128xf32>
    %49 = arith.mulf %43, %48 : vector<16x128xf32>
    %50 = math.absf %49 : vector<16x128xf32>
    %cst_19 = arith.constant 0.111111112 : f32
    %51 = vector.broadcast %cst_19 : f32 to vector<16x128xf32>
    %52 = arith.cmpf olt, %50, %51 : vector<16x128xf32>
    %53 = arith.extui %52 : vector<16x128xi1> to vector<16x128xi32>
    %54 = arith.sitofp %53 : vector<16x128xi32> to vector<16x128xf32>
    %55 = arith.mulf %49, %49 : vector<16x128xf32>
    %cst_20 = arith.constant 4.500000e+00 : f32
    %56 = vector.broadcast %cst_20 : f32 to vector<16x128xf32>
    %57 = arith.mulf %55, %56 : vector<16x128xf32>
    %58 = arith.mulf %57, %54 : vector<16x128xf32>
    %cst_21 = arith.constant 0.055555556 : f32
    %59 = vector.broadcast %cst_21 : f32 to vector<16x128xf32>
    %60 = arith.subf %50, %59 : vector<16x128xf32>
    %cst_22 = arith.constant 1.000000e+00 : f32
    %61 = vector.broadcast %cst_22 : f32 to vector<16x128xf32>
    %62 = arith.subf %61, %54 : vector<16x128xf32>
    %63 = arith.mulf %60, %62 : vector<16x128xf32>
    %64 = arith.addf %58, %63 : vector<16x128xf32>
    %c3 = arith.constant 3 : index
    %c0_23 = arith.constant 0 : index
    %c0_24 = arith.constant 0 : index
    %65 = vector.load %arg1[%c3, %c0_23, %c0_24] : memref<4x16x128xf32, #tpu.memory_space<vmem>>, vector<1x16x128xf32>
    %66 = vector.shape_cast %65 : vector<1x16x128xf32> to vector<16x128xf32>
    %67 = arith.mulf %66, %64 : vector<16x128xf32>
    %68 = vector.shape_cast %67 : vector<16x128xf32> to vector<1x16x128xf32>
    %cst_25 = arith.constant dense<0.000000e+00> : vector<1xf32>
    %69 = vector.multi_reduction <add>, %68, %cst_25 [1, 2] : vector<1x16x128xf32> to vector<1xf32>
    %70 = vector.shape_cast %69 : vector<1xf32> to vector<1x1x1xf32>
    %71 = vector.extract %70[0, 0, 0] : f32 from vector<1x1x1xf32>
    %c2_26 = arith.constant 2 : index
    %c0_27 = arith.constant 0 : index
    %c0_28 = arith.constant 0 : index
    %72 = vector.load %arg4[%c2_26, %c0_27, %c0_28] : memref<4x8x128xf32, #tpu.memory_space<vmem>>, vector<1x8x128xf32>
    %73 = vector.shape_cast %72 : vector<1x8x128xf32> to vector<8x128xf32>
    %c0_29 = arith.constant 0 : index
    %c0_30 = arith.constant 0 : index
    %c0_31 = arith.constant 0 : index
    %74 = vector.load %arg4[%c0_29, %c0_30, %c0_31] : memref<4x8x128xf32, #tpu.memory_space<vmem>>, vector<1x8x128xf32>
    %75 = vector.shape_cast %74 : vector<1x8x128xf32> to vector<8x128xf32>
    %c1_32 = arith.constant 1 : index
    %c0_33 = arith.constant 0 : index
    %c0_34 = arith.constant 0 : index
    %76 = vector.load %arg4[%c1_32, %c0_33, %c0_34] : memref<4x8x128xf32, #tpu.memory_space<vmem>>, vector<1x8x128xf32>
    %77 = vector.shape_cast %76 : vector<1x8x128xf32> to vector<8x128xf32>
    %78 = arith.subf %75, %77 : vector<8x128xf32>
    %79 = arith.mulf %73, %78 : vector<8x128xf32>
    %80 = math.absf %79 : vector<8x128xf32>
    %cst_35 = arith.constant 1.000000e+00 : f32
    %81 = vector.broadcast %cst_35 : f32 to vector<8x128xf32>
    %82 = arith.cmpf olt, %80, %81 : vector<8x128xf32>
    %83 = arith.extui %82 : vector<8x128xi1> to vector<8x128xi32>
    %84 = arith.sitofp %83 : vector<8x128xi32> to vector<8x128xf32>
    %85 = arith.mulf %79, %79 : vector<8x128xf32>
    %cst_36 = arith.constant 5.000000e-01 : f32
    %86 = vector.broadcast %cst_36 : f32 to vector<8x128xf32>
    %87 = arith.mulf %85, %86 : vector<8x128xf32>
    %88 = arith.mulf %87, %84 : vector<8x128xf32>
    %cst_37 = arith.constant 5.000000e-01 : f32
    %89 = vector.broadcast %cst_37 : f32 to vector<8x128xf32>
    %90 = arith.subf %80, %89 : vector<8x128xf32>
    %cst_38 = arith.constant 1.000000e+00 : f32
    %91 = vector.broadcast %cst_38 : f32 to vector<8x128xf32>
    %92 = arith.subf %91, %84 : vector<8x128xf32>
    %93 = arith.mulf %90, %92 : vector<8x128xf32>
    %94 = arith.addf %88, %93 : vector<8x128xf32>
    %c3_39 = arith.constant 3 : index
    %c0_40 = arith.constant 0 : index
    %c0_41 = arith.constant 0 : index
    %95 = vector.load %arg4[%c3_39, %c0_40, %c0_41] : memref<4x8x128xf32, #tpu.memory_space<vmem>>, vector<1x8x128xf32>
    %96 = vector.shape_cast %95 : vector<1x8x128xf32> to vector<8x128xf32>
    %97 = arith.mulf %96, %94 : vector<8x128xf32>
    %98 = vector.shape_cast %97 : vector<8x128xf32> to vector<1x8x128xf32>
    %cst_42 = arith.constant dense<0.000000e+00> : vector<1xf32>
    %99 = vector.multi_reduction <add>, %98, %cst_42 [1, 2] : vector<1x8x128xf32> to vector<1xf32>
    %100 = vector.shape_cast %99 : vector<1xf32> to vector<1x1x1xf32>
    %101 = vector.extract %100[0, 0, 0] : f32 from vector<1x1x1xf32>
    %c0_43 = arith.constant 0 : index
    %c0_44 = arith.constant 0 : index
    %102 = vector.load %arg2[%c0_43, %c0_44] : memref<32x128xf32, #tpu.memory_space<vmem>>, vector<32x128xf32>
    %c0_45 = arith.constant 0 : index
    %c0_46 = arith.constant 0 : index
    %103 = vector.load %arg3[%c0_45, %c0_46] : memref<32x128xi32, #tpu.memory_space<vmem>>, vector<32x128xi32>
    %104 = tpu.iota {dimensions = array<i32: 1>} : vector<32x128xi32>
    %105 = arith.cmpi eq, %104, %103 : vector<32x128xi32>
    %106 = arith.extui %105 : vector<32x128xi1> to vector<32x128xi32>
    %107 = arith.sitofp %106 : vector<32x128xi32> to vector<32x128xf32>
    %cst_47 = arith.constant dense<0.000000e+00> : vector<32xf32>
    %108 = vector.multi_reduction <add>, %107, %cst_47 [1] : vector<32x128xf32> to vector<32xf32>
    %109 = vector.shape_cast %108 : vector<32xf32> to vector<32x1xf32>
    %cst_48 = arith.constant dense<0xFF800000> : vector<32xf32>
    %110 = vector.multi_reduction <maximumf>, %102, %cst_48 [1] : vector<32x128xf32> to vector<32xf32>
    %111 = vector.shape_cast %110 : vector<32xf32> to vector<32x1xf32>
    %112 = vector.broadcast %111 : vector<32x1xf32> to vector<32x128xf32>
    %113 = arith.subf %102, %112 : vector<32x128xf32>
    %114 = math.exp %113 : vector<32x128xf32>
    %cst_49 = arith.constant dense<0.000000e+00> : vector<32xf32>
    %115 = vector.multi_reduction <add>, %114, %cst_49 [1] : vector<32x128xf32> to vector<32xf32>
    %116 = vector.shape_cast %115 : vector<32xf32> to vector<32x1xf32>
    %117 = math.log %116 : vector<32x1xf32>
    %118 = arith.addf %111, %117 : vector<32x1xf32>
    %119 = arith.mulf %102, %107 : vector<32x128xf32>
    %cst_50 = arith.constant dense<0.000000e+00> : vector<32xf32>
    %120 = vector.multi_reduction <add>, %119, %cst_50 [1] : vector<32x128xf32> to vector<32xf32>
    %121 = vector.shape_cast %120 : vector<32xf32> to vector<32x1xf32>
    %122 = arith.subf %118, %121 : vector<32x1xf32>
    %123 = arith.mulf %122, %109 : vector<32x1xf32>
    %124 = vector.broadcast %111 : vector<32x1xf32> to vector<32x128xf32>
    %125 = arith.cmpf oeq, %102, %124 : vector<32x128xf32>
    %c128_i32 = arith.constant 128 : i32
    %126 = vector.broadcast %c128_i32 : i32 to vector<32x128xi32>
    %127 = arith.select %125, %104, %126 : vector<32x128xi1>, vector<32x128xi32>
    %cst_51 = arith.constant dense<2147483647> : vector<32xi32>
    %128 = vector.multi_reduction <minsi>, %127, %cst_51 [1] : vector<32x128xi32> to vector<32xi32>
    %129 = vector.shape_cast %128 : vector<32xi32> to vector<32x1xi32>
    %130 = vector.broadcast %129 : vector<32x1xi32> to vector<32x128xi32>
    %131 = arith.cmpi eq, %104, %130 : vector<32x128xi32>
    %132 = arith.extui %131 : vector<32x128xi1> to vector<32x128xi32>
    %133 = arith.sitofp %132 : vector<32x128xi32> to vector<32x128xf32>
    %134 = arith.mulf %133, %107 : vector<32x128xf32>
    %cst_52 = arith.constant dense<0.000000e+00> : vector<32xf32>
    %135 = vector.multi_reduction <add>, %134, %cst_52 [1] : vector<32x128xf32> to vector<32xf32>
    %136 = vector.shape_cast %135 : vector<32xf32> to vector<32x1xf32>
    %137 = vector.shape_cast %123 : vector<32x1xf32> to vector<1x32x1xf32>
    %cst_53 = arith.constant dense<0.000000e+00> : vector<1xf32>
    %138 = vector.multi_reduction <add>, %137, %cst_53 [1, 2] : vector<1x32x1xf32> to vector<1xf32>
    %139 = vector.shape_cast %138 : vector<1xf32> to vector<1x1x1xf32>
    %140 = vector.extract %139[0, 0, 0] : f32 from vector<1x1x1xf32>
    %141 = vector.shape_cast %136 : vector<32x1xf32> to vector<1x32x1xf32>
    %cst_54 = arith.constant dense<0.000000e+00> : vector<1xf32>
    %142 = vector.multi_reduction <add>, %141, %cst_54 [1, 2] : vector<1x32x1xf32> to vector<1xf32>
    %143 = vector.shape_cast %142 : vector<1xf32> to vector<1x1x1xf32>
    %144 = vector.extract %143[0, 0, 0] : f32 from vector<1x1x1xf32>
    %cst_55 = arith.constant 1.000000e+00 : f32
    %145 = arith.maximumf %37, %cst_55 : f32
    %146 = arith.divf %33, %145 : f32
    %147 = arith.divf %41, %145 : f32
    %cst_56 = arith.constant 2.000000e+00 : f32
    %148 = arith.divf %71, %cst_56 : f32
    %cst_57 = arith.constant 3.200000e+01 : f32
    %149 = arith.divf %140, %cst_57 : f32
    %cst_58 = arith.constant 3.200000e+01 : f32
    %150 = arith.divf %144, %cst_58 : f32
    %cst_59 = arith.constant 3.200000e+01 : f32
    %151 = arith.divf %101, %cst_59 : f32
    %152 = arith.addf %146, %148 : f32
    %153 = arith.addf %152, %149 : f32
    %154 = arith.addf %153, %151 : f32
    %c0_60 = arith.constant 0 : index
    %155 = memref.load %arg5[%c0_60] : memref<8xf32, #tpu.memory_space<smem>>
    memref.store %154, %arg5[%c0_60] : memref<8xf32, #tpu.memory_space<smem>>
    %c1_61 = arith.constant 1 : index
    %156 = memref.load %arg5[%c1_61] : memref<8xf32, #tpu.memory_space<smem>>
    memref.store %146, %arg5[%c1_61] : memref<8xf32, #tpu.memory_space<smem>>
    %c2_62 = arith.constant 2 : index
    %157 = memref.load %arg5[%c2_62] : memref<8xf32, #tpu.memory_space<smem>>
    memref.store %148, %arg5[%c2_62] : memref<8xf32, #tpu.memory_space<smem>>
    %c3_63 = arith.constant 3 : index
    %158 = memref.load %arg5[%c3_63] : memref<8xf32, #tpu.memory_space<smem>>
    memref.store %149, %arg5[%c3_63] : memref<8xf32, #tpu.memory_space<smem>>
    %c4 = arith.constant 4 : index
    %159 = memref.load %arg5[%c4] : memref<8xf32, #tpu.memory_space<smem>>
    memref.store %151, %arg5[%c4] : memref<8xf32, #tpu.memory_space<smem>>
    %c5 = arith.constant 5 : index
    %160 = memref.load %arg5[%c5] : memref<8xf32, #tpu.memory_space<smem>>
    memref.store %147, %arg5[%c5] : memref<8xf32, #tpu.memory_space<smem>>
    %c6 = arith.constant 6 : index
    %161 = memref.load %arg5[%c6] : memref<8xf32, #tpu.memory_space<smem>>
    memref.store %150, %arg5[%c6] : memref<8xf32, #tpu.memory_space<smem>>
    %c7 = arith.constant 7 : index
    %162 = memref.load %arg5[%c7] : memref<8xf32, #tpu.memory_space<smem>>
    memref.store %37, %arg5[%c7] : memref<8xf32, #tpu.memory_space<smem>>
    return
  }
}

</mosaic_0001>

<llo_original>
// kernel: squeeze.2
$region0: #{squeeze.2}
  %s0 = inlined_call_operand.vmem [shape: f32[2,1,3,8,8], index: 0, kind: input, shape index: {}]
  %s1 = inlined_call_operand.vmem [shape: f32[384], index: 1, kind: output, shape index: {}]
  $region1: #{squeeze.2} parent=0
    #allocation0 [shape = 'u8[4096]{0}', space=vmem, size = 0x1000, scoped, tag = 'scoped mem for output reshape']
    %s2 = smov 3
    %v3 = vld [vmem:[%s0] ss:$16 sm:%s2]
    %s4 = scalar_lea.vmem %s0, 30
    %v5 = vld [vmem:[%s4] sm:$0x4]
    %vm6 = vcmask 1042434
    %v7 = vsel %vm6, %v5, %v3
    %vm8 = vcmask 64512
    %9 = vst.msk [vmem:[#allocation0] sm:$0x7] %vm8, %v7
    %s10 = scalar_lea.vmem %s0, 15
    %s11 = smov 3
    %v12 = vld [vmem:[%s10] ss:$16 sm:%s11]
    %s13 = scalar_lea.vmem %s0, 45
    %v14 = vld [vmem:[%s13] sm:$0x4]
    %vm15 = vcmask 1042434
    %v16 = vsel %vm15, %v14, %v12
    %17 = vrot.lane.b32.xlu0 %v16, 120
    %v18 = vpop.permute.xlu0 %17
    %vm19 = vcmask 1048512
    %20 = vst.msk [vmem:[#allocation0] sm:$0x7] %vm19, %v18
    %s21 = scalar_lea.vmem %s0, 14
    %s22 = smov 3
    %v23 = vld [vmem:[%s21] ss:$16 sm:%s22]
    %s24 = scalar_lea.vmem %s0, 44
    %v25 = vld [vmem:[%s24] sm:$0x4]
    %vm26 = vcmask 1042434
    %v27 = vsel %vm26, %v25, %v23
    %28 = vrot.lane.b32.xlu0 %v27, 112
    %v29 = vpop.permute.xlu0 %28
    %vm30 = vcmask 982912
    %31 = vst.msk [vmem:[#allocation0] sm:$0x7] %vm30, %v29
    %s32 = scalar_lea.vmem %s0, 13
    %s33 = smov 3
    %v34 = vld [vmem:[%s32] ss:$16 sm:%s33]
    %s35 = scalar_lea.vmem %s0, 43
    %v36 = vld [vmem:[%s35] sm:$0x4]
    %vm37 = vcmask 1042434
    %v38 = vsel %vm37, %v36, %v34
    %39 = vrot.lane.b32.xlu0 %v38, 104
    %v40 = vpop.permute.xlu0 %39
    %vm41 = vcmask 917312
    %42 = vst.msk [vmem:[#allocation0] sm:$0x7] %vm41, %v40
    %s43 = scalar_lea.vmem %s0, 12
    %s44 = smov 3
    %v45 = vld [vmem:[%s43] ss:$16 sm:%s44]
    %s46 = scalar_lea.vmem %s0, 42
    %v47 = vld [vmem:[%s46] sm:$0x4]
    %vm48 = vcmask 1042434
    %v49 = vsel %vm48, %v47, %v45
    %50 = vrot.lane.b32.xlu0 %v49, 96
    %v51 = vpop.permute.xlu0 %50
    %vm52 = vcmask 851712
    %53 = vst.msk [vmem:[#allocation0] sm:$0x7] %vm52, %v51
    %s54 = scalar_lea.vmem %s0, 11
    %s55 = smov 3
    %v56 = vld [vmem:[%s54] ss:$16 sm:%s55]
    %s57 = scalar_lea.vmem %s0, 41
    %v58 = vld [vmem:[%s57] sm:$0x4]
    %vm59 = vcmask 1042434
    %v60 = vsel %vm59, %v58, %v56
    %61 = vrot.lane.b32.xlu0 %v60, 88
    %v62 = vpop.permute.xlu0 %61
    %vm63 = vcmask 786112
    %64 = vst.msk [vmem:[#allocation0] sm:$0x7] %vm63, %v62
    %s65 = scalar_lea.vmem %s0, 10
    %s66 = smov 3
    %v67 = vld [vmem:[%s65] ss:$16 sm:%s66]
    %s68 = scalar_lea.vmem %s0, 40
    %v69 = vld [vmem:[%s68] sm:$0x4]
    %vm70 = vcmask 1042434
    %v71 = vsel %vm70, %v69, %v67
    %72 = vrot.lane.b32.xlu0 %v71, 80
    %v73 = vpop.permute.xlu0 %72
    %vm74 = vcmask 720512
    %75 = vst.msk [vmem:[#allocation0] sm:$0x7] %vm74, %v73
    %s76 = scalar_lea.vmem %s0, 9
    %s77 = smov 3
    %v78 = vld [vmem:[%s76] ss:$16 sm:%s77]
    %s79 = scalar_lea.vmem %s0, 39
    %v80 = vld [vmem:[%s79] sm:$0x4]
    %vm81 = vcmask 1042434
    %v82 = vsel %vm81, %v80, %v78
    %83 = vrot.lane.b32.xlu0 %v82, 72
    %v84 = vpop.permute.xlu0 %83
    %vm85 = vcmask 654912
    %86 = vst.msk [vmem:[#allocation0] sm:$0x7] %vm85, %v84
    %s87 = scalar_lea.vmem %s0, 8
    %s88 = smov 3
    %v89 = vld [vmem:[%s87] ss:$16 sm:%s88]
    %s90 = scalar_lea.vmem %s0, 38
    %v91 = vld [vmem:[%s90] sm:$0x4]
    %vm92 = vcmask 1042434
    %v93 = vsel %vm92, %v91, %v89
    %94 = vrot.lane.b32.xlu0 %v93, 64
    %v95 = vpop.permute.xlu0 %94
    %vm96 = vcmask 589312
    %97 = vst.msk [vmem:[#allocation0] sm:$0x7] %vm96, %v95
    %s98 = scalar_lea.vmem %s0, 7
    %s99 = smov 3
    %v100 = vld [vmem:[%s98] ss:$16 sm:%s99]
    %s101 = scalar_lea.vmem %s0, 37
    %v102 = vld [vmem:[%s101] sm:$0x4]
    %vm103 = vcmask 1042434
    %v104 = vsel %vm103, %v102, %v100
    %105 = vrot.lane.b32.xlu0 %v104, 56
    %v106 = vpop.permute.xlu0 %105
    %vm107 = vcmask 523712
    %108 = vst.msk [vmem:[#allocation0] sm:$0x7] %vm107, %v106
    %s109 = scalar_lea.vmem %s0, 6
    %s110 = smov 3
    %v111 = vld [vmem:[%s109] ss:$16 sm:%s110]
    %s112 = scalar_lea.vmem %s0, 36
    %v113 = vld [vmem:[%s112] sm:$0x4]
    %vm114 = vcmask 1042434
    %v115 = vsel %vm114, %v113, %v111
    %116 = vrot.lane.b32.xlu0 %v115, 48
    %v117 = vpop.permute.xlu0 %116
    %vm118 = vcmask 458112
    %119 = vst.msk [vmem:[#allocation0] sm:$0x7] %vm118, %v117
    %s120 = scalar_lea.vmem %s0, 5
    %s121 = smov 3
    %v122 = vld [vmem:[%s120] ss:$16 sm:%s121]
    %s123 = scalar_lea.vmem %s0, 35
    %v124 = vld [vmem:[%s123] sm:$0x4]
    %vm125 = vcmask 1042434
    %v126 = vsel %vm125, %v124, %v122
    %127 = vrot.lane.b32.xlu0 %v126, 40
    %v128 = vpop.permute.xlu0 %127
    %vm129 = vcmask 392512
    %130 = vst.msk [vmem:[#allocation0] sm:$0x7] %vm129, %v128
    %s131 = scalar_lea.vmem %s0, 4
    %s132 = smov 3
    %v133 = vld [vmem:[%s131] ss:$16 sm:%s132]
    %s134 = scalar_lea.vmem %s0, 34
    %v135 = vld [vmem:[%s134] sm:$0x4]
    %vm136 = vcmask 1042434
    %v137 = vsel %vm136, %v135, %v133
    %138 = vrot.lane.b32.xlu0 %v137, 32
    %v139 = vpop.permute.xlu0 %138
    %vm140 = vcmask 326912
    %141 = vst.msk [vmem:[#allocation0] sm:$0x7] %vm140, %v139
    %s142 = scalar_lea.vmem %s0, 3
    %s143 = smov 3
    %v144 = vld [vmem:[%s142] ss:$16 sm:%s143]
    %s145 = scalar_lea.vmem %s0, 33
    %v146 = vld [vmem:[%s145] sm:$0x4]
    %vm147 = vcmask 1042434
    %v148 = vsel %vm147, %v146, %v144
    %149 = vrot.lane.b32.xlu0 %v148, 24
    %v150 = vpop.permute.xlu0 %149
    %vm151 = vcmask 261312
    %152 = vst.msk [vmem:[#allocation0] sm:$0x7] %vm151, %v150
    %s153 = scalar_lea.vmem %s0, 2
    %s154 = smov 3
    %v155 = vld [vmem:[%s153] ss:$16 sm:%s154]
    %s156 = scalar_lea.vmem %s0, 32
    %v157 = vld [vmem:[%s156] sm:$0x4]
    %vm158 = vcmask 1042434
    %v159 = vsel %vm158, %v157, %v155
    %160 = vrot.lane.b32.xlu0 %v159, 16
    %v161 = vpop.permute.xlu0 %160
    %vm162 = vcmask 195712
    %163 = vst.msk [vmem:[#allocation0] sm:$0x7] %vm162, %v161
    %s164 = scalar_lea.vmem %s0, 1
    %s165 = smov 3
    %v166 = vld [vmem:[%s164] ss:$16 sm:%s165]
    %s167 = scalar_lea.vmem %s0, 31
    %v168 = vld [vmem:[%s167] sm:$0x4]
    %vm169 = vcmask 1042434
    %v170 = vsel %vm169, %v168, %v166
    %171 = vrot.lane.b32.xlu0 %v170, 8
    %v172 = vpop.permute.xlu0 %171
    %vm173 = vcmask 130112
    %174 = vst.msk [vmem:[#allocation0] sm:$0x7] %vm173, %v172
    %s176 = ssub.s32 16, 1
    %v177 = vld [vmem:[#allocation0] sm:%s176]
    %s179 = ssub.s32 16, 1
    %180 = vst [vmem:[%s1] sm:%s179] %v177

// kernel: detection_loss_forward.1
$region0: #{detection_loss_forward.1}
  #allocation0 [shape = 'u32[]', space=smem, size = 0x4, offset = 0x4, fixed_abs, tag = 'smem constant byte address 0x4 - core index']
  #allocation1 [shape = 'u32[72,128]{1,0:T(1,128)}', space=vmem, size = 0x9000, scoped, tag = 'internal scratch']
  %s0 = inlined_call_operand.vmem [shape: f32[3,8,128], index: 0, kind: input, shape index: {}]
  %s1 = inlined_call_operand.vmem [shape: f32[4,16,128], index: 1, kind: input, shape index: {}]
  %s2 = inlined_call_operand.vmem [shape: f32[32,128], index: 2, kind: input, shape index: {}]
  %s3 = inlined_call_operand.vmem [shape: s32[32,128], index: 3, kind: input, shape index: {}]
  %s4 = inlined_call_operand.vmem [shape: f32[4,8,128], index: 4, kind: input, shape index: {}]
  %s5 = inlined_call_operand.hbm [shape: f32[8], index: 5, kind: output, shape index: {}]
  %s6 = sld [smem:[#allocation0]]
  $region30: #{detection_loss_forward.1} parent=0
    _
  %s8 = ssub.s32 1, %s6
  %s9 = scalar_select 0, %s8, %s6
  $region1: #{detection_loss_forward.1} parent=0
    #allocation2 [shape = 'u8[512]{0}', space=smem, size = 0x200, scoped, tag = 'output window, operand 0, single buffered']
    #allocation3 [shape = 's32[1]{0}', space=sflag, size = 0x4, scoped, tag = 'scoped memory for detection_loss_forward.1']
    %10 = vsyncpa [#allocation3], 0
    // Predicated region
    $region2: #{detection_loss_forward.1} parent=1 // pred_check
      _
    $region3: #{detection_loss_forward.1} parent=1 // pred_check_branch
      %12 = sbr.rel (0) target = $region5
    $region4: #{detection_loss_forward.1} parent=1 // pred_region
      _
    $region5: #{detection_loss_forward.1} parent=1 // pred_fallthru
      _
    // Predicated region
    $region6: #{detection_loss_forward.1} parent=1 // pred_check
      _
    $region7: #{detection_loss_forward.1} parent=1 // pred_check_branch
      %14 = sbr.rel (0) target = $region9
    $region8: #{detection_loss_forward.1} parent=1 // pred_region
      _
    $region9: #{detection_loss_forward.1} parent=1 // pred_fallthru
      _
    // Predicated region
    $region10: #{detection_loss_forward.1} parent=1 // pred_check
      _
    $region11: #{detection_loss_forward.1} parent=1 // pred_check_branch
      %16 = sbr.rel (0) target = $region13
    $region12: #{detection_loss_forward.1} parent=1 // pred_region
      _
    $region13: #{detection_loss_forward.1} parent=1 // pred_fallthru
      _
    // Predicated region
    $region14: #{detection_loss_forward.1} parent=1 // pred_check
      _
    $region15: #{detection_loss_forward.1} parent=1 // pred_check_branch
      %18 = sbr.rel (0) target = $region17
    $region16: #{detection_loss_forward.1} parent=1 // pred_region
      _
    $region17: #{detection_loss_forward.1} parent=1 // pred_fallthru
      _
    // Predicated region
    $region18: #{detection_loss_forward.1} parent=1 // pred_check
      _
    $region19: #{detection_loss_forward.1} parent=1 // pred_check_branch
      %20 = sbr.rel (0) target = $region21
    $region20: #{detection_loss_forward.1} parent=1 // pred_region
      _
    $region21: #{detection_loss_forward.1} parent=1 // pred_fallthru
      _
    %v21 = vld [vmem:[%s0] sm:$0xff]
    %s22 = scalar_lea.vmem %s0, 8
    %v23 = vld [vmem:[%s22] sm:$0xff]
    %s24 = scalar_lea.vmem %s0, 16
    %v25 = vld [vmem:[%s24] sm:$0xff]
    %v26 = vmax.f32 %v21, %v23
    %v27 = vsub.f32 %v21, %v26
    %v28 = vmul.f32 %v27, 1.442695
    %v29 = vpow.pop %v28
    %v30 = vsub.f32 %v23, %v26
    %v31 = vmul.f32 %v30, 1.442695
    %v32 = vpow.pop %v31
    %v33 = vadd.f32 %v29, %v32
    %v34 = vlog2.pop %v33
    %v35 = vmul.f32 %v34, 0.6931472
    %v36 = vadd.f32 %v26, %v35
    %vm37 = vcmp.eq.f32.partialorder %v25, 1.0
    %v38 = vsel %vm37, %v23, %v21
    %vm39 = vcmp.ne.f32.partialorder %v25, -1.0
    %v40 = vsel %vm39, 1, 0
    %v41 = vcvt.s32.f32 %v40
    %v42 = vsub.f32 %v36, %v38
    %v43 = vmul.f32 %v42, %v41
    %vm44 = vcmp.gt.f32.partialorder %v23, %v21
    %v45 = vsel %vm44, 1, 0
    %v46 = vcvt.s32.f32 %v45
    %vm47 = vcmp.eq.f32.partialorder %v46, %v25
    %v48 = vsel %vm47, 1, 0
    %v49 = vcvt.s32.f32 %v48
    %v50 = vmul.f32 %v49, %v41
    %51 = vadd.xlane.f32.xlu0 %v43
    %v52 = vpop.xlane.xlu0 %51
    %v53 = vrot.slane %v52, 4
    %v54 = vadd.f32 %v52, %v53
    %v55 = vrot.slane %v54, 2
    %v56 = vadd.f32 %v54, %v55
    %v57 = vrot.slane %v56, 1
    %v58 = vadd.f32 %v56, %v57
    %s59 = vtos %v58
    %60 = vadd.xlane.f32.xlu0 %v41
    %v61 = vpop.xlane.xlu0 %60
    %v62 = vrot.slane %v61, 4
    %v63 = vadd.f32 %v61, %v62
    %v64 = vrot.slane %v63, 2
    %v65 = vadd.f32 %v63, %v64
    %v66 = vrot.slane %v65, 1
    %v67 = vadd.f32 %v65, %v66
    %s68 = vtos %v67
    %69 = vadd.xlane.f32.xlu0 %v50
    %v70 = vpop.xlane.xlu0 %69
    %v71 = vrot.slane %v70, 4
    %v72 = vadd.f32 %v70, %v71
    %v73 = vrot.slane %v72, 2
    %v74 = vadd.f32 %v72, %v73
    %v75 = vrot.slane %v74, 1
    %v76 = vadd.f32 %v74, %v75
    %s77 = vtos %v76
    %s78 = scalar_lea.vmem %s1, 32
    %v79 = vld [vmem:[%s78] sm:$0xff]
    %v80 = vld [vmem:[%s78 + $0x8] sm:$0xff]
    %v81 = vld [vmem:[%s1] sm:$0xff]
    %v82 = vld [vmem:[%s1 + $0x8] sm:$0xff]
    %s83 = scalar_lea.vmem %s1, 16
    %v84 = vld [vmem:[%s83] sm:$0xff]
    %v85 = vld [vmem:[%s83 + $0x8] sm:$0xff]
    %v86 = vsub.f32 %v81, %v84
    %v87 = vsub.f32 %v82, %v85
    %v88 = vmul.f32 %v79, %v86
    %v89 = vmul.f32 %v80, %v87
    %v90 = vand.u32 2147483647, %v88
    %v91 = vand.u32 2147483647, %v89
    %vm92 = vcmp.lt.f32.partialorder %v90, 0.11111111
    %vm93 = vcmp.lt.f32.partialorder %v91, 0.11111111
    %v94 = vsel %vm92, 1, 0
    %v95 = vsel %vm93, 1, 0
    %v96 = vcvt.s32.f32 %v94
    %v97 = vcvt.s32.f32 %v95
    %v98 = vmul.f32 %v88, %v88
    %v99 = vmul.f32 %v89, %v89
    %v100 = vmul.f32 %v98, 4.5
    %v101 = vmul.f32 %v99, 4.5
    %v102 = vmul.f32 %v100, %v96
    %v103 = vmul.f32 %v101, %v97
    %v104 = vsub.f32 %v90, 0.055555556
    %v105 = vsub.f32 %v91, 0.055555556
    %v106 = vsub.f32 1.0, %v96
    %v107 = vsub.f32 1.0, %v97
    %v108 = vmul.f32 %v104, %v106
    %v109 = vmul.f32 %v105, %v107
    %v110 = vadd.f32 %v102, %v108
    %v111 = vadd.f32 %v103, %v109
    %s112 = scalar_lea.vmem %s1, 48
    %v113 = vld [vmem:[%s112] sm:$0xff]
    %v114 = vld [vmem:[%s112 + $0x8] sm:$0xff]
    %v115 = vmul.f32 %v113, %v110
    %v116 = vmul.f32 %v114, %v111
    %v117 = vadd.f32 %v115, %v116
    %118 = vadd.xlane.f32.xlu0 %v117
    %v119 = vpop.xlane.xlu0 %118
    %v120 = vrot.slane %v119, 4
    %v121 = vadd.f32 %v119, %v120
    %v122 = vrot.slane %v121, 2
    %v123 = vadd.f32 %v121, %v122
    %v124 = vrot.slane %v123, 1
    %v125 = vadd.f32 %v123, %v124
    %s126 = vtos %v125
    %s127 = scalar_lea.vmem %s4, 16
    %v128 = vld [vmem:[%s127] sm:$0xff]
    %v129 = vld [vmem:[%s4] sm:$0xff]
    %s130 = scalar_lea.vmem %s4, 8
    %v131 = vld [vmem:[%s130] sm:$0xff]
    %v132 = vsub.f32 %v129, %v131
    %v133 = vmul.f32 %v128, %v132
    %v134 = vand.u32 2147483647, %v133
    %vm135 = vcmp.lt.f32.partialorder %v134, 1.0
    %v136 = vsel %vm135, 1, 0
    %v137 = vcvt.s32.f32 %v136
    %v138 = vmul.f32 %v133, %v133
    %v139 = vmul.f32 %v138, 0.5
    %v140 = vmul.f32 %v139, %v137
    %v141 = vsub.f32 %v134, 0.5
    %v142 = vsub.f32 1.0, %v137
    %v143 = vmul.f32 %v141, %v142
    %v144 = vadd.f32 %v140, %v143
    %s145 = scalar_lea.vmem %s4, 24
    %v146 = vld [vmem:[%s145] sm:$0xff]
    %v147 = vmul.f32 %v146, %v144
    %148 = vadd.xlane.f32.xlu0 %v147
    %v149 = vpop.xlane.xlu0 %148
    %v150 = vrot.slane %v149, 4
    %v151 = vadd.f32 %v149, %v150
    %v152 = vrot.slane %v151, 2
    %v153 = vadd.f32 %v151, %v152
    %v154 = vrot.slane %v153, 1
    %v155 = vadd.f32 %v153, %v154
    %s156 = vtos %v155
    %v157 = vld [vmem:[%s2] sm:$0xff]
    %v158 = vld [vmem:[%s2 + $0x8] sm:$0xff]
    %v159 = vld [vmem:[%s2 + $0x10] sm:$0xff]
    %v160 = vld [vmem:[%s2 + $0x18] sm:$0xff]
    %v161 = vld [vmem:[%s3] sm:$0xff]
    %v162 = vld [vmem:[%s3 + $0x8] sm:$0xff]
    %v163 = vld [vmem:[%s3 + $0x10] sm:$0xff]
    %v164 = vld [vmem:[%s3 + $0x18] sm:$0xff]
    %v165 = vlaneseq
    %v166 = vand.u32 %v165, 127
    %vm167 = vcmp.eq.s32.totalorder %v166, %v161
    %vm168 = vcmp.eq.s32.totalorder %v166, %v162
    %vm169 = vcmp.eq.s32.totalorder %v166, %v163
    %vm170 = vcmp.eq.s32.totalorder %v166, %v164
    %v171 = vsel %vm167, 1, 0
    %v172 = vsel %vm168, 1, 0
    %v173 = vsel %vm169, 1, 0
    %v174 = vsel %vm170, 1, 0
    %v175 = vcvt.s32.f32 %v171
    %v176 = vcvt.s32.f32 %v172
    %v177 = vcvt.s32.f32 %v173
    %v178 = vcvt.s32.f32 %v174
    %179 = vadd.xlane.f32.xlu0 %v175
    %v180 = vpop.xlane.xlu0 %179
    %181 = vadd.xlane.f32.xlu0 %v176
    %v182 = vpop.xlane.xlu0 %181
    %183 = vadd.xlane.f32.xlu0 %v177
    %v184 = vpop.xlane.xlu0 %183
    %185 = vadd.xlane.f32.xlu0 %v178
    %v186 = vpop.xlane.xlu0 %185
    %187 = vmax.xlane.f32.xlu0 %v157
    %v188 = vpop.xlane.xlu0 %187
    %189 = vmax.xlane.f32.xlu0 %v158
    %v190 = vpop.xlane.xlu0 %189
    %191 = vmax.xlane.f32.xlu0 %v159
    %v192 = vpop.xlane.xlu0 %191
    %193 = vmax.xlane.f32.xlu0 %v160
    %v194 = vpop.xlane.xlu0 %193
    %v195 = vsub.f32 %v157, %v188
    %v196 = vsub.f32 %v158, %v190
    %v197 = vsub.f32 %v159, %v192
    %v198 = vsub.f32 %v160, %v194
    %v199 = vmul.f32 %v195, 1.442695
    %v200 = vpow.pop %v199
    %v201 = vmul.f32 %v196, 1.442695
    %v202 = vpow.pop %v201
    %v203 = vmul.f32 %v197, 1.442695
    %v204 = vpow.pop %v203
    %v205 = vmul.f32 %v198, 1.442695
    %v206 = vpow.pop %v205
    %207 = vadd.xlane.f32.xlu0 %v200
    %v208 = vpop.xlane.xlu0 %207
    %209 = vadd.xlane.f32.xlu0 %v202
    %v210 = vpop.xlane.xlu0 %209
    %211 = vadd.xlane.f32.xlu0 %v204
    %v212 = vpop.xlane.xlu0 %211
    %213 = vadd.xlane.f32.xlu0 %v206
    %v214 = vpop.xlane.xlu0 %213
    %v215 = vlog2.pop %v208
    %v216 = vmul.f32 %v215, 0.6931472
    %v217 = vlog2.pop %v210
    %v218 = vmul.f32 %v217, 0.6931472
    %v219 = vlog2.pop %v212
    %v220 = vmul.f32 %v219, 0.6931472
    %v221 = vlog2.pop %v214
    %v222 = vmul.f32 %v221, 0.6931472
    %v223 = vadd.f32 %v188, %v216
    %v224 = vadd.f32 %v190, %v218
    %v225 = vadd.f32 %v192, %v220
    %v226 = vadd.f32 %v194, %v222
    %v227 = vmul.f32 %v157, %v175
    %v228 = vmul.f32 %v158, %v176
    %v229 = vmul.f32 %v159, %v177
    %v230 = vmul.f32 %v160, %v178
    %231 = vadd.xlane.f32.xlu0 %v227
    %v232 = vpop.xlane.xlu0 %231
    %233 = vadd.xlane.f32.xlu0 %v228
    %v234 = vpop.xlane.xlu0 %233
    %235 = vadd.xlane.f32.xlu0 %v229
    %v236 = vpop.xlane.xlu0 %235
    %237 = vadd.xlane.f32.xlu0 %v230
    %v238 = vpop.xlane.xlu0 %237
    %v239 = vsub.f32 %v223, %v232
    %v240 = vsub.f32 %v224, %v234
    %v241 = vsub.f32 %v225, %v236
    %v242 = vsub.f32 %v226, %v238
    %v243 = vmul.f32 %v239, %v180
    %v244 = vmul.f32 %v240, %v182
    %v245 = vmul.f32 %v241, %v184
    %v246 = vmul.f32 %v242, %v186
    %vm247 = vcmp.eq.f32.partialorder %v157, %v188
    %vm248 = vcmp.eq.f32.partialorder %v158, %v190
    %vm249 = vcmp.eq.f32.partialorder %v159, %v192
    %vm250 = vcmp.eq.f32.partialorder %v160, %v194
    %v251 = vsel %vm247, %v166, 128
    %v252 = vsel %vm248, %v166, 128
    %v253 = vsel %vm249, %v166, 128
    %v254 = vsel %vm250, %v166, 128
    %v255 = vand.u32 %v251, 65535
    %v256 = vshra.s32 %v251, 16
    %v257 = vcvt.s32.f32 %v255
    %v258 = vcvt.s32.f32 %v256
    %259 = vmin.xlane.f32.xlu0 %v258
    %v260 = vpop.xlane.xlu0 %259
    %vm261 = vcmp.eq.f32.partialorder %v258, %v260
    %v262 = vsel %vm261, %v257, inf
    %263 = vmin.xlane.f32.xlu0 %v262
    %v264 = vpop.xlane.xlu0 %263
    %v265 = vcvt.f32.s32 %v264
    %v266 = vcvt.f32.s32 %v260
    %v267 = vshll.u32 %v266, 16
    %v268 = vadd.s32 %v267, %v265
    %v269 = vand.u32 %v252, 65535
    %v270 = vshra.s32 %v252, 16
    %v271 = vcvt.s32.f32 %v269
    %v272 = vcvt.s32.f32 %v270
    %273 = vmin.xlane.f32.xlu0 %v272
    %v274 = vpop.xlane.xlu0 %273
    %vm275 = vcmp.eq.f32.partialorder %v272, %v274
    %v276 = vsel %vm275, %v271, inf
    %277 = vmin.xlane.f32.xlu0 %v276
    %v278 = vpop.xlane.xlu0 %277
    %v279 = vcvt.f32.s32 %v278
    %v280 = vcvt.f32.s32 %v274
    %v281 = vshll.u32 %v280, 16
    %v282 = vadd.s32 %v281, %v279
    %v283 = vand.u32 %v253, 65535
    %v284 = vshra.s32 %v253, 16
    %v285 = vcvt.s32.f32 %v283
    %v286 = vcvt.s32.f32 %v284
    %287 = vmin.xlane.f32.xlu0 %v286
    %v288 = vpop.xlane.xlu0 %287
    %vm289 = vcmp.eq.f32.partialorder %v286, %v288
    %v290 = vsel %vm289, %v285, inf
    %291 = vmin.xlane.f32.xlu0 %v290
    %v292 = vpop.xlane.xlu0 %291
    %v293 = vcvt.f32.s32 %v292
    %v294 = vcvt.f32.s32 %v288
    %v295 = vshll.u32 %v294, 16
    %v296 = vadd.s32 %v295, %v293
    %v297 = vand.u32 %v254, 65535
    %v298 = vshra.s32 %v254, 16
    %v299 = vcvt.s32.f32 %v297
    %v300 = vcvt.s32.f32 %v298
    %301 = vmin.xlane.f32.xlu0 %v300
    %v302 = vpop.xlane.xlu0 %301
    %vm303 = vcmp.eq.f32.partialorder %v300, %v302
    %v304 = vsel %vm303, %v299, inf
    %305 = vmin.xlane.f32.xlu0 %v304
    %v306 = vpop.xlane.xlu0 %305
    %v307 = vcvt.f32.s32 %v306
    %v308 = vcvt.f32.s32 %v302
    %v309 = vshll.u32 %v308, 16
    %v310 = vadd.s32 %v309, %v307
    %vm311 = vcmp.eq.s32.totalorder %v166, %v268
    %vm312 = vcmp.eq.s32.totalorder %v166, %v282
    %vm313 = vcmp.eq.s32.totalorder %v166, %v296
    %vm314 = vcmp.eq.s32.totalorder %v166, %v310
    %v315 = vsel %vm311, 1, 0
    %v316 = vsel %vm312, 1, 0
    %v317 = vsel %vm313, 1, 0
    %v318 = vsel %vm314, 1, 0
    %v319 = vcvt.s32.f32 %v315
    %v320 = vcvt.s32.f32 %v316
    %v321 = vcvt.s32.f32 %v317
    %v322 = vcvt.s32.f32 %v318
    %v323 = vmul.f32 %v319, %v175
    %v324 = vmul.f32 %v320, %v176
    %v325 = vmul.f32 %v321, %v177
    %v326 = vmul.f32 %v322, %v178
    %327 = vadd.xlane.f32.xlu0 %v323
    %v328 = vpop.xlane.xlu0 %327
    %329 = vadd.xlane.f32.xlu0 %v324
    %v330 = vpop.xlane.xlu0 %329
    %331 = vadd.xlane.f32.xlu0 %v325
    %v332 = vpop.xlane.xlu0 %331
    %333 = vadd.xlane.f32.xlu0 %v326
    %v334 = vpop.xlane.xlu0 %333
    %vm335 = vcmask 7168
    %v336 = vsel %vm335, %v243, 0.0
    %v337 = vsel %vm335, %v244, 0.0
    %v338 = vadd.f32 %v336, %v337
    %v339 = vsel %vm335, %v245, 0.0
    %v340 = vadd.f32 %v338, %v339
    %v341 = vsel %vm335, %v246, 0.0
    %v342 = vadd.f32 %v340, %v341
    %343 = vadd.xlane.f32.xlu0 %v342
    %v344 = vpop.xlane.xlu0 %343
    %v345 = vrot.slane %v344, 4
    %v346 = vadd.f32 %v344, %v345
    %v347 = vrot.slane %v346, 2
    %v348 = vadd.f32 %v346, %v347
    %v349 = vrot.slane %v348, 1
    %v350 = vadd.f32 %v348, %v349
    %s351 = vtos %v350
    %v352 = vsel %vm335, %v328, 0.0
    %v353 = vsel %vm335, %v330, 0.0
    %v354 = vadd.f32 %v352, %v353
    %v355 = vsel %vm335, %v332, 0.0
    %v356 = vadd.f32 %v354, %v355
    %v357 = vsel %vm335, %v334, 0.0
    %v358 = vadd.f32 %v356, %v357
    %359 = vadd.xlane.f32.xlu0 %v358
    %v360 = vpop.xlane.xlu0 %359
    %v361 = vrot.slane %v360, 4
    %v362 = vadd.f32 %v360, %v361
    %v363 = vrot.slane %v362, 2
    %v364 = vadd.f32 %v362, %v363
    %v365 = vrot.slane %v364, 1
    %v366 = vadd.f32 %v364, %v365
    %s367 = vtos %v366
    %s368 = smax.f32 %s68, 1.0
    %v369 = vstv %s368
    %v370 = vrcp.pop %v369
    %v371 = vmul.f32 %v369, %v370
    %v372 = vsub.f32 1.0, %v371
    %v373 = vmul.f32 %v370, %v372
    %v374 = vadd.f32 %v370, %v373
    %vm375 = vweird.f32 %v369
    %vm376 = vweird.f32 %v370
    %vm377 = vmor %vm375, %vm376
    %v378 = vsel %vm377, %v370, %v374
    %v379 = vand.u32 2147483647, %v369
    %vm380 = vcmp.eq.f32.partialorder %v379, 8.507059e+37
    %v381 = vand.u32 %v369, 2147483648
    %v382 = vor.u32 1.1754944e-38, %v381
    %v383 = vsel %vm380, %v382, %v378
    %s384 = vtos %v383
    %s385 = smul.f32 %s59, %s384
    %v386 = vstv %s368
    %v387 = vrcp.pop %v386
    %v388 = vmul.f32 %v386, %v387
    %v389 = vsub.f32 1.0, %v388
    %v390 = vmul.f32 %v387, %v389
    %v391 = vadd.f32 %v387, %v390
    %vm392 = vweird.f32 %v386
    %vm393 = vweird.f32 %v387
    %vm394 = vmor %vm392, %vm393
    %v395 = vsel %vm394, %v387, %v391
    %v396 = vand.u32 2147483647, %v386
    %vm397 = vcmp.eq.f32.partialorder %v396, 8.507059e+37
    %v398 = vand.u32 %v386, 2147483648
    %v399 = vor.u32 1.1754944e-38, %v398
    %v400 = vsel %vm397, %v399, %v395
    %s401 = vtos %v400
    %s402 = smul.f32 %s77, %s401
    %v403 = vrcp.pop 2.0
    %v404 = vmul.f32 2.0, %v403
    %v405 = vsub.f32 1.0, %v404
    %v406 = vmul.f32 %v403, %v405
    %v407 = vadd.f32 %v403, %v406
    %vm408 = vweird.f32 %v403
    %v409 = vsel %vm408, %v403, %v407
    %s410 = vtos %v409
    %s411 = smul.f32 %s126, %s410
    %v412 = vrcp.pop 32.0
    %v413 = vmul.f32 32.0, %v412
    %v414 = vsub.f32 1.0, %v413
    %v415 = vmul.f32 %v412, %v414
    %v416 = vadd.f32 %v412, %v415
    %vm417 = vweird.f32 %v412
    %v418 = vsel %vm417, %v412, %v416
    %s419 = vtos %v418
    %s420 = smul.f32 %s351, %s419
    %v421 = vrcp.pop 32.0
    %v422 = vmul.f32 32.0, %v421
    %v423 = vsub.f32 1.0, %v422
    %v424 = vmul.f32 %v421, %v423
    %v425 = vadd.f32 %v421, %v424
    %vm426 = vweird.f32 %v421
    %v427 = vsel %vm426, %v421, %v425
    %s428 = vtos %v427
    %s429 = smul.f32 %s367, %s428
    %v430 = vrcp.pop 32.0
    %v431 = vmul.f32 32.0, %v430
    %v432 = vsub.f32 1.0, %v431
    %v433 = vmul.f32 %v430, %v432
    %v434 = vadd.f32 %v430, %v433
    %vm435 = vweird.f32 %v430
    %v436 = vsel %vm435, %v430, %v434
    %s437 = vtos %v436
    %s438 = smul.f32 %s156, %s437
    %s439 = sadd.f32 %s385, %s411
    %s440 = sadd.f32 %s439, %s420
    %s441 = sadd.f32 %s440, %s438
    %s442 = scalar_lea.smem [#allocation2], 0
    %443 = sst [smem:[%s442]] %s441
    %s444 = scalar_lea.smem [#allocation2], 1
    %445 = sst [smem:[%s444]] %s385
    %s446 = scalar_lea.smem [#allocation2], 2
    %447 = sst [smem:[%s446]] %s411
    %s448 = scalar_lea.smem [#allocation2], 3
    %449 = sst [smem:[%s448]] %s420
    %s450 = scalar_lea.smem [#allocation2], 4
    %451 = sst [smem:[%s450]] %s438
    %s452 = scalar_lea.smem [#allocation2], 5
    %453 = sst [smem:[%s452]] %s402
    %s454 = scalar_lea.smem [#allocation2], 6
    %455 = sst [smem:[%s454]] %s429
    %s456 = scalar_lea.smem [#allocation2], 7
    %457 = sst [smem:[%s456]] %s68
    // Predicated region
    $region22: #{detection_loss_forward.1} parent=1 // pred_check
      _
    $region23: #{detection_loss_forward.1} parent=1 // pred_check_branch
      %459 = sbr.rel (0) target = $region25
    $region24: #{detection_loss_forward.1} parent=1 // pred_region
      %461 = vsyncadd [#allocation3], 0
      %s463 = sshll.u32 %s5, 4
      %s464 = int_to_ptr.hbm [resolvable:$true] %s463
      %466 = dma.smem_to_hbm [#allocation2], 16, %s464, [#allocation3]
    $region25: #{detection_loss_forward.1} parent=1 // pred_fallthru
      _
    // Predicated region
    $region26: #{detection_loss_forward.1} parent=1 // pred_check
      _
    $region27: #{detection_loss_forward.1} parent=1 // pred_check_branch
      %468 = sbr.rel (0) target = $region29
    $region28: #{detection_loss_forward.1} parent=1 // pred_region
      %470 = dma.done [#allocation3], 16
    $region29: #{detection_loss_forward.1} parent=1 // pred_fallthru
      _
    %471 = sfence
    %472 = vsyncpa [#allocation3], 1

</llo_original>
